<compile_context>
chip_gen: v5e
topology: v5e:2x2
jax: 0.10.0
libtpu: 0.0.40
codegen_flags: <defaults>
</compile_context>

<pallas_src>
import jax
import jax.numpy as jnp
from jax.experimental import pallas as pl
from jax.experimental.pallas import tpu as pltpu


_POOL_CHUNK = 512          # decimation-matmul K chunk (input columns per dot)
_MAX_TILE_LANES = 16384    # absolute cap on a length tile (keeps DMAs/unrolls sane)


# --------------------------- sizing helpers ---------------------------------
def _vmem_capacity_bytes():
    """Physical VMEM of this generation (v5e/v6e: 128 MiB, v7x: 64 MiB/core)."""
    try:
        info = pltpu.get_tpu_info()
        cap = int(getattr(info, "vmem_capacity_bytes", 0) or 0)
        if cap > 0:
            return cap
    except Exception:
        pass
    return 64 * 1024 * 1024            # conservative fallback (v7x per-core size)


def _vmem_limit_bytes():
    # ~54 MiB on v7x (64 MiB physical), ~108 MiB on v5e/v6e (128 MiB physical).
    return int(_vmem_capacity_bytes() * 0.85)


def _pick_length_tile(length, bytes_per_lane, resident_bytes=0,
                      max_lanes=_MAX_TILE_LANES):
    """Largest multiple-of-128 divisor of `length` (which must be 128-aligned)
    whose pipelined slabs fit the generation-specific VMEM budget."""
    budget = int(_vmem_capacity_bytes() * 0.70) - resident_bytes
    budget = max(budget, 2 * 1024 * 1024)
    t_max = budget // max(bytes_per_lane, 1)
    t_max = max(128, (min(t_max, max_lanes) // 128) * 128)
    t = max(128, min(length, t_max))
    while length % t:
        t -= 128
    return t


def _pad_length(x, multiple):
    """Zero-pad the last (length) axis of NCL `x` up to a multiple."""
    L = x.shape[-1]
    Lp = ((L + multiple - 1) // multiple) * multiple
    if Lp == L:
        return x
    return jnp.pad(x, ((0, 0), (0, 0), (0, Lp - L)))


# ----------------------------- conv path ------------------------------------
def _conv1d_kernel(x_ref, edge_ref, w_ref, b_ref, o_ref):
    """3-tap, stride-1, 'same' Conv1d on one (batch, length-tile) block.

    x_ref:    (1, C, tL)    current length tile
    edge_ref: (1, 1, C, 2)  [..., 0] = column just left of the tile (zero at start)
                            [..., 1] = column just right of the tile (zero at end)
    w_ref:    (3, C, C)     tap-major weights, w_ref[k] == W[:, :, k]
    b_ref:    (C, 1)        bias
    o_ref:    (1, C, tL)    output tile
    """
    tL = o_ref.shape[2]
    x = x_ref[0]                                      # (C, tL)
    edges = edge_ref[...]                             # (1, 1, C, 2)
    left = edges[0, 0, :, 0:1]                        # (C, 1)
    right = edges[0, 0, :, 1:2]                       # (C, 1)

    # 1-lane shifts of the tile (in-VMEM work, hidden under the HBM DMA in
    # this memory-bound kernel).
    # TODO(synk): move the shifts to pltpu.roll + iota/where (XLU) if profiling
    # shows the shift copies on the critical path.
    x_prev = jnp.concatenate([left, x[:, :tL - 1]], axis=1)
    x_next = jnp.concatenate([x[:, 1:], right], axis=1)

    acc = jnp.dot(w_ref[0], x_prev, preferred_element_type=jnp.float32)
    acc = acc + jnp.dot(w_ref[1], x, preferred_element_type=jnp.float32)
    acc = acc + jnp.dot(w_ref[2], x_next, preferred_element_type=jnp.float32)
    # TODO(synk): for C ~128-512 a single fused K=3C contraction fills the MXU
    # better; not worth the stacked-operand copy while the op is HBM-bound.
    o_ref[0] = (acc + b_ref[...]).astype(o_ref.dtype)


def _conv_edges(x, tL, nl):
    """(N, nl, C, 2) boundary columns for every length tile (zeros at the ends)."""
    N, C, _ = x.shape
    xr = x.reshape(N, C, nl, tL)
    zero = jnp.zeros((N, C, 1), x.dtype)
    left = jnp.concatenate([zero, xr[:, :, : nl - 1, tL - 1]], axis=2)   # (N, C, nl)
    right = jnp.concatenate([xr[:, :, 1:, 0], zero], axis=2)             # (N, C, nl)
    edges = jnp.stack([left, right], axis=-1)                            # (N, C, nl, 2)
    return jnp.transpose(edges, (0, 2, 1, 3))                            # (N, nl, C, 2)


def conv1d_same(x, w, b):
    """nn.Conv1d(C, C, kernel_size=3, stride=1, padding=1), NCL layout."""
    N, C, L = x.shape
    xp = _pad_length(x, 128)          # zero tail == 'same' zero padding; sliced off
    Lp = xp.shape[-1]

    # Resident VMEM (double-buffered by the pipeline even with constant maps):
    # weights (3,C,C) + bias (C,1) + edge block (C,2).
    resident = 2 * (3 * C * C + C + 2 * C) * 4
    # Per length-lane: 2x in + 2x out pipelined slabs + in-kernel temporaries.
    tL = _pick_length_tile(Lp, bytes_per_lane=32 * C, resident_bytes=resident)
    nl = Lp // tL

    edges = _conv_edges(xp, tL, nl)                   # (N, nl, C, 2), tiny
    w_taps = jnp.transpose(w, (2, 0, 1))              # (3, C, C): contiguous per tap
    b2 = b.reshape(C, 1)

    cost = pl.CostEstimate(
        flops=6 * N * C * C * Lp,
        transcendentals=0,
        bytes_accessed=4 * (2 * N * C * Lp + 3 * C * C + C + 2 * N * nl * C),
    )
    center = lambda n, l: (n, 0, l)
    # TODO(synk): bf16 I/O (accumulate in f32) would ~halve HBM traffic if the
    # surrounding model tolerates it; kept f32 to match the PyTorch module.
    out = pl.pallas_call(
        _conv1d_kernel,
        out_shape=jax.ShapeDtypeStruct((N, C, Lp), x.dtype),
        grid_spec=pltpu.PrefetchScalarGridSpec(
            num_scalar_prefetch=0,
            grid=(N, nl),
            in_specs=[
                pl.BlockSpec((1, C, tL), center),
                pl.BlockSpec((1, 1, C, 2), lambda n, l: (n, l, 0, 0)),  # 2 cols/step
                pl.BlockSpec((3, C, C), lambda n, l: (0, 0, 0)),        # resident W
                pl.BlockSpec((C, 1), lambda n, l: (0, 0)),              # resident b
            ],
            out_specs=pl.BlockSpec((1, C, tL), center),
        ),
        compiler_params=pltpu.CompilerParams(
            dimension_semantics=("parallel", "parallel"),   # megacore on v7x
            vmem_limit_bytes=_vmem_limit_bytes()),
        cost_estimate=cost,
    )(xp, edges, w_taps, b2)
    return out if Lp == L else out[:, :, :L]


# --------------------------- avg-pool path ----------------------------------
def _avgpool_kernel(x_ref, p_ref, o_ref):
    """AvgPool1d(kernel_size=2, stride=2) on one (batch, length-tile) block.

    Adjacent lane pairs are averaged with a small resident (K, K//2)
    decimation matrix: out[:, j] = 0.5*(x[:, 2j] + x[:, 2j+1]).
    """
    x = x_ref[0]                      # (C, tLi)
    p = p_ref[...]                    # (K, K//2), resident
    tLi = x.shape[1]
    K = p.shape[0]
    off = 0
    while off < tLi:                  # static Python loop (unrolled at trace time)
        k = min(K, tLi - off)
        o_ref[0, :, off // 2:(off + k) // 2] = jnp.dot(
            x[:, off:off + k], p[:k, :k // 2],
            preferred_element_type=jnp.float32).astype(o_ref.dtype)
        off += k


def _pool_matrix(k):
    rows = jax.lax.broadcasted_iota(jnp.int32, (k, k // 2), 0)
    cols = jax.lax.broadcasted_iota(jnp.int32, (k, k // 2), 1)
    return jnp.where(rows // 2 == cols, 0.5, 0.0).astype(jnp.float32)


def avgpool1d_k2s2(x):
    """AvgPool1d with kernel_size=2, stride=2 (floor mode: odd tail dropped)."""
    # TODO(synk): the original `nn.AvgPool1d(stride=2)` is a TypeError in
    # PyTorch (kernel_size is required); we implement the intended k=2, s=2.
    N, C, L = x.shape
    Lo = L // 2
    if Lo == 0:
        return jnp.zeros((N, C, 0), x.dtype)

    xp = _pad_length(x, 256)          # pooled length becomes 128-aligned
    Lp = xp.shape[-1]
    Lop = Lp // 2

    K = min(_POOL_CHUNK, Lp)
    p = _pool_matrix(K)               # built once in the wrapper, VMEM-resident

    resident = 2 * K * (K // 2) * 4
    # Per output lane: 2x in (2 cols each) + 2x out pipelined slabs + temps.
    tLo = _pick_length_tile(Lop, bytes_per_lane=32 * C, resident_bytes=resident,
                            max_lanes=4096)
    tLi = 2 * tLo
    no = Lop // tLo

    cost = pl.CostEstimate(
        flops=2 * N * C * Lop * K,
        transcendentals=0,
        bytes_accessed=4 * (N * C * Lp + N * C * Lop + K * (K // 2)),
    )
    out = pl.pallas_call(
        _avgpool_kernel,
        out_shape=jax.ShapeDtypeStruct((N, C, Lop), x.dtype),
        grid_spec=pltpu.PrefetchScalarGridSpec(
            num_scalar_prefetch=0,
            grid=(N, no),
            in_specs=[pl.BlockSpec((1, C, tLi), lambda n, j: (n, 0, j)),
                      pl.BlockSpec((K, K // 2), lambda n, j: (0, 0))],  # resident P
            out_specs=pl.BlockSpec((1, C, tLo), lambda n, j: (n, 0, j)),
        ),
        compiler_params=pltpu.CompilerParams(
            dimension_semantics=("parallel", "parallel"),
            vmem_limit_bytes=_vmem_limit_bytes()),
        cost_estimate=cost,
    )(xp, p)
    return out if Lop == Lo else out[:, :, :Lo]


# ------------------------------ module --------------------------------------
class Downsample:
    """Pallas port of Models/models.py::Downsample (forward pass only)."""

    def __init__(self, channels, use_conv, key=None):
        self.use_conv = use_conv
        self.channels = channels
        if use_conv:
            key = jax.random.PRNGKey(42) if key is None else key
            kw, kb = jax.random.split(key)
            bound = 1.0 / jnp.sqrt(channels * 3.0)    # PyTorch Conv1d default init
            self.weight = jax.random.uniform(
                kw, (channels, channels, 3), jnp.float32, -bound, bound)
            self.bias = jax.random.uniform(
                kb, (channels,), jnp.float32, -bound, bound)

    def __call__(self, x):
        if self.use_conv:
            return conv1d_same(x, self.weight, self.bias)
        return avgpool1d_k2s2(x)


# ------------------------------- main ---------------------------------------
if __name__ == "__main__":
    key = jax.random.PRNGKey(0)
    N, C, L = 2, 4, 16
    x = jax.random.normal(key, (N, C, L), jnp.float32)

    # conv branch (stride-1 'same' conv, as in the PyTorch module)
    ds_conv = Downsample(C, use_conv=True)
    y_conv = jax.block_until_ready(ds_conv(x))
    assert y_conv.shape == (N, C, L)

    ref = jax.lax.conv_general_dilated(
        x, ds_conv.weight, window_strides=(1,), padding=((1, 1),),
        dimension_numbers=("NCH", "OIH", "NCH")) + ds_conv.bias[None, :, None]
    assert jnp.allclose(y_conv, ref, atol=1e-5, rtol=1e-5)

    # avg-pool branch
    ds_pool = Downsample(C, use_conv=False)
    y_pool = jax.block_until_ready(ds_pool(x))
    assert y_pool.shape == (N, C, L // 2)
    ref_pool = 0.5 * (x[:, :, 0::2] + x[:, :, 1::2])
    assert jnp.allclose(y_pool, ref_pool, atol=1e-6)

    print("KERNEL_OK")
</pallas_src>

<mosaic_0001>
module attributes {stable_mosaic.version = 11 : i64} {
  func.func @_conv1d_kernel(%arg0: i32, %arg1: i32, %arg2: memref<1x4x128xf32, #tpu.memory_space<vmem>>, %arg3: memref<1x1x4x2xf32, #tpu.memory_space<vmem>>, %arg4: memref<3x4x4xf32, #tpu.memory_space<vmem>>, %arg5: memref<4x1xf32, #tpu.memory_space<vmem>>, %arg6: memref<1x4x128xf32, #tpu.memory_space<vmem>>) attributes {dimension_semantics = [#tpu.dimension_semantics<parallel>, #tpu.dimension_semantics<parallel>], iteration_bounds = array<i64: 2, 1>, scalar_prefetch = 0 : i64, scratch_operands = 0 : i64, tpu.core_type = #tpu.core_type<tc>, window_params = [{transform_indices = @transform_0, window_bounds = array<i64: 1, 4, 128>}, {transform_indices = @transform_1, window_bounds = array<i64: 1, 1, 4, 2>}, {pipeline_mode = #tpu.pipeline_mode<synchronous>, transform_indices = @transform_2, window_bounds = array<i64: 3, 4, 4>}, {pipeline_mode = #tpu.pipeline_mode<synchronous>, transform_indices = @transform_3, window_bounds = array<i64: 4, 1>}, {transform_indices = @transform_4, window_bounds = array<i64: 1, 4, 128>}]} {
    %c0 = arith.constant 0 : index
    %c0_0 = arith.constant 0 : index
    %c0_1 = arith.constant 0 : index
    %0 = vector.load %arg2[%c0, %c0_0, %c0_1] : memref<1x4x128xf32, #tpu.memory_space<vmem>>, vector<1x4x128xf32>
    %1 = vector.shape_cast %0 : vector<1x4x128xf32> to vector<4x128xf32>
    %c0_2 = arith.constant 0 : index
    %c0_3 = arith.constant 0 : index
    %c0_4 = arith.constant 0 : index
    %c0_5 = arith.constant 0 : index
    %2 = vector.load %arg3[%c0_2, %c0_3, %c0_4, %c0_5] : memref<1x1x4x2xf32, #tpu.memory_space<vmem>>, vector<1x1x4x2xf32>
    %3 = vector.extract_strided_slice %2 {offsets = [0, 0, 0, 0], sizes = [1, 1, 4, 1], strides = [1, 1, 1, 1]} : vector<1x1x4x2xf32> to vector<1x1x4x1xf32>
    %4 = vector.shape_cast %3 : vector<1x1x4x1xf32> to vector<4x1xf32>
    %5 = vector.extract_strided_slice %2 {offsets = [0, 0, 0, 1], sizes = [1, 1, 4, 1], strides = [1, 1, 1, 1]} : vector<1x1x4x2xf32> to vector<1x1x4x1xf32>
    %6 = vector.shape_cast %5 : vector<1x1x4x1xf32> to vector<4x1xf32>
    %7 = vector.extract_strided_slice %1 {offsets = [0, 0], sizes = [4, 127], strides = [1, 1]} : vector<4x128xf32> to vector<4x127xf32>
    %8 = tpu.concatenate %4, %7 in 1 : vector<4x1xf32>, vector<4x127xf32> -> vector<4x128xf32>
    %9 = vector.extract_strided_slice %1 {offsets = [0, 1], sizes = [4, 127], strides = [1, 1]} : vector<4x128xf32> to vector<4x127xf32>
    %10 = tpu.concatenate %9, %6 in 1 : vector<4x127xf32>, vector<4x1xf32> -> vector<4x128xf32>
    %c0_6 = arith.constant 0 : index
    %c0_7 = arith.constant 0 : index
    %c0_8 = arith.constant 0 : index
    %11 = vector.load %arg4[%c0_6, %c0_7, %c0_8] : memref<3x4x4xf32, #tpu.memory_space<vmem>>, vector<1x4x4xf32>
    %12 = vector.shape_cast %11 : vector<1x4x4xf32> to vector<4x4xf32>
    %cst = arith.constant dense<0.000000e+00> : vector<4x128xf32>
    %13 = tpu.matmul %12, %8, %cst {dimension_numbers = #tpu.dot_dimension_numbers<[1], [0], [0], [1], [0, 0, 1, 1], [], []>} : vector<4x4xf32>, vector<4x128xf32>, vector<4x128xf32> -> vector<4x128xf32>
    %c1 = arith.constant 1 : index
    %c0_9 = arith.constant 0 : index
    %c0_10 = arith.constant 0 : index
    %14 = vector.load %arg4[%c1, %c0_9, %c0_10] : memref<3x4x4xf32, #tpu.memory_space<vmem>>, vector<1x4x4xf32>
    %15 = vector.shape_cast %14 : vector<1x4x4xf32> to vector<4x4xf32>
    %cst_11 = arith.constant dense<0.000000e+00> : vector<4x128xf32>
    %16 = tpu.matmul %15, %1, %cst_11 {dimension_numbers = #tpu.dot_dimension_numbers<[1], [0], [0], [1], [0, 0, 1, 1], [], []>} : vector<4x4xf32>, vector<4x128xf32>, vector<4x128xf32> -> vector<4x128xf32>
    %17 = arith.addf %13, %16 : vector<4x128xf32>
    %c2 = arith.constant 2 : index
    %c0_12 = arith.constant 0 : index
    %c0_13 = arith.constant 0 : index
    %18 = vector.load %arg4[%c2, %c0_12, %c0_13] : memref<3x4x4xf32, #tpu.memory_space<vmem>>, vector<1x4x4xf32>
    %19 = vector.shape_cast %18 : vector<1x4x4xf32> to vector<4x4xf32>
    %cst_14 = arith.constant dense<0.000000e+00> : vector<4x128xf32>
    %20 = tpu.matmul %19, %10, %cst_14 {dimension_numbers = #tpu.dot_dimension_numbers<[1], [0], [0], [1], [0, 0, 1, 1], [], []>} : vector<4x4xf32>, vector<4x128xf32>, vector<4x128xf32> -> vector<4x128xf32>
    %21 = arith.addf %17, %20 : vector<4x128xf32>
    %c0_15 = arith.constant 0 : index
    %c0_16 = arith.constant 0 : index
    %22 = vector.load %arg5[%c0_15, %c0_16] : memref<4x1xf32, #tpu.memory_space<vmem>>, vector<4x1xf32>
    %23 = vector.broadcast %22 : vector<4x1xf32> to vector<4x128xf32>
    %24 = arith.addf %21, %23 : vector<4x128xf32>
    %c0_17 = arith.constant 0 : index
    %c0_18 = arith.constant 0 : index
    %c0_19 = arith.constant 0 : index
    %25 = vector.load %arg6[%c0_17, %c0_18, %c0_19] : memref<1x4x128xf32, #tpu.memory_space<vmem>>, vector<1x4x128xf32>
    %26 = vector.shape_cast %25 : vector<1x4x128xf32> to vector<4x128xf32>
    %27 = vector.shape_cast %24 : vector<4x128xf32> to vector<1x4x128xf32>
    tpu.vector_store %arg6[%c0_17, %c0_18, %c0_19], %27 {strides = array<i32>} : memref<1x4x128xf32, #tpu.memory_space<vmem>>, vector<1x4x128xf32>,
    return
  }
  func.func @transform_0(%arg0: i32, %arg1: i32) -> (i32, i32, i32) {
    %c0_i32 = arith.constant 0 : i32
    %c0_i32_0 = arith.constant 0 : i32
    return %arg0, %c0_i32, %arg1 : i32, i32, i32
  }
  func.func @transform_1(%arg0: i32, %arg1: i32) -> (i32, i32, i32, i32) {
    %c0_i32 = arith.constant 0 : i32
    %c0_i32_0 = arith.constant 0 : i32
    %c0_i32_1 = arith.constant 0 : i32
    return %arg0, %arg1, %c0_i32, %c0_i32_0 : i32, i32, i32, i32
  }
  func.func @transform_2(%arg0: i32, %arg1: i32) -> (i32, i32, i32) {
    %c0_i32 = arith.constant 0 : i32
    %c0_i32_0 = arith.constant 0 : i32
    %c0_i32_1 = arith.constant 0 : i32
    %c0_i32_2 = arith.constant 0 : i32
    return %c0_i32, %c0_i32_0, %c0_i32_1 : i32, i32, i32
  }
  func.func @transform_3(%arg0: i32, %arg1: i32) -> (i32, i32) {
    %c0_i32 = arith.constant 0 : i32
    %c0_i32_0 = arith.constant 0 : i32
    %c0_i32_1 = arith.constant 0 : i32
    return %c0_i32, %c0_i32_0 : i32, i32
  }
  func.func @transform_4(%arg0: i32, %arg1: i32) -> (i32, i32, i32) {
    %c0_i32 = arith.constant 0 : i32
    %c0_i32_0 = arith.constant 0 : i32
    return %arg0, %c0_i32, %arg1 : i32, i32, i32
  }
}

</mosaic_0001>

<llo_original>
// kernel: tpu_custom_call.1
$region0: #{tpu_custom_call.1}
  #allocation0 [shape = 'u32[]', space=smem, size = 0x4, offset = 0x4, fixed_abs, tag = 'smem constant byte address 0x4 - core index']
  #allocation1 [shape = 'u32[72,128]{1,0:T(1,128)}', space=vmem, size = 0x9000, scoped, tag = 'internal scratch']
  %s0 = inlined_call_operand.hbm [shape: f32[2,4,128], index: 0, kind: input, shape index: {}]
  %s1 = inlined_call_operand.vmem [shape: f32[2,1,4,2], index: 1, kind: input, shape index: {}]
  %s2 = inlined_call_operand.vmem [shape: f32[3,4,4], index: 2, kind: input, shape index: {}]
  %s3 = inlined_call_operand.vmem [shape: f32[4,1], index: 3, kind: input, shape index: {}]
  %s4 = inlined_call_operand.hbm [shape: f32[2,4,128], index: 4, kind: output, shape index: {}]
  %s5 = sld [smem:[#allocation0]]
  $region53: #{tpu_custom_call.1} parent=0
    _
  %s7 = ssub.s32 1, %s5
  %s8 = scalar_select 0, %s7, %s5
  $region1: #{tpu_custom_call.1} parent=0
    #allocation2 [shape = 'u8[4096]{0}', space=vmem, size = 0x1000, scoped, tag = 'input window, operand 0']
    #allocation3 [shape = 's32[2]{0}', space=sflag, size = 0x8, scoped, tag = 'scoped memory for tpu_custom_call.1']
    #allocation4 [shape = 's32[2]{0}', space=sflag, size = 0x8, scoped, tag = 'scoped memory for tpu_custom_call.1']
    #allocation5 [shape = 'u8[4096]{0}', space=vmem, size = 0x1000, scoped, tag = 'output window, operand 0']
    %9 = vsyncpa [#allocation3], 0
    %s10 = scalar_lea.sflag [#allocation3], 1
    %11 = vsyncpa %s10, 0
    %12 = vsyncpa [#allocation4], 0
    %s13 = scalar_lea.sflag [#allocation4], 1
    %14 = vsyncpa %s13, 0
    loop: start=0, step=1, limit=4
    $region2: #{tpu_custom_call.1} parent=1 // loop_pre_header
      _
    $region3: #{tpu_custom_call.1} parent=1 // loop_header
      %s16 = sphi 0, %s20
      %p17 = scmp.ge.s32.totalorder %s16, 4
      %s23 = sphi 0, %s35
      %s24 = sphi 0, %s31
      %s25 = sphi 0, %s23
      %s26 = sphi 0, %s24
      %s27 = sphi 0, %s25
      %s28 = sphi 0, %s26
      %s40 = sphi 0, %s42
      %s43 = sphi 0, %s40
      %s44 = sphi 0, %s43
      %s60 = sphi 0, %s44
      %s68 = sphi 0, %s70
      %s71 = sphi 0, %s68
      %s72 = sphi 0, %s71
      %s88 = sphi 0, %s72
      %s92 = sphi 0, %s92
      %s94 = sphi 0, %s92
      %s95 = sphi 0, %s94
      %s109 = sphi 0, %s95
      %s113 = sphi 0, %s113
      %s115 = sphi 0, %s113
      %s116 = sphi 0, %s115
      %s130 = sphi 0, %s116
      %s138 = sphi 0, %s140
      %s141 = sphi 0, %s138
      %s142 = sphi 0, %s141
      %s158 = sphi 0, %s142
    $region4: #{tpu_custom_call.1} parent=1 // loop_header_branch
      %19 = sbr.rel (%p17) target = $region8
    $region5: #{tpu_custom_call.1} parent=1 // loop_body
      %s21 = ssub.s32 %s16, 1
      %s22 = ssub.s32 %s16, 2
      %s29 = sadd.s32 1, %s24
      %p30 = scmp.ge.s32.totalorder %s29, 1
      %s31 = scalar_select %p30, 0, %s29
      %s32 = sadd.s32 1, %s23
      %s33 = scalar_select %p30, %s32, %s23
      %p34 = scmp.ge.s32.totalorder %s33, 2
      %s35 = scalar_select %p34, 0, %s33
      %s36 = ssub.s32 %s23, %s35
      %s37 = ssub.s32 %s24, %s31
      %s38 = sor.u32 %s36, %s37
      %p39 = scmp.eq.s32.totalorder %s38, 0
      %s41 = sadd.s32 %s40, 1
      %s42 = scalar_select %p39, %s40, %s41
      %p45 = pneg %p39
      %p46 = scmp.eq.s32.totalorder %s16, 1
      %p47 = por %p45, %p46
      %p48 = scmp.ne.s32.totalorder %s40, %s43
      %p49 = scmp.eq.s32.totalorder %s16, 0
      %p50 = por %p48, %p49
      %p51 = scmp.ne.s32.totalorder %s40, %s43
      %p52 = scmp.eq.s32.totalorder %s21, 1
      %p53 = por %p51, %p52
      %p54 = scmp.ne.s32.totalorder %s43, %s44
      %p55 = scmp.eq.s32.totalorder %s21, 0
      %p56 = por %p54, %p55
      %p57 = scmp.ne.s32.totalorder %s43, %s44
      %p58 = scmp.eq.s32.totalorder %s22, 1
      %p59 = por %p57, %p58
      %p61 = scmp.ne.s32.totalorder %s44, %s60
      %p62 = scmp.eq.s32.totalorder %s22, 0
      %p63 = por %p61, %p62
      %s64 = ssub.s32 %s23, %s35
      %s65 = ssub.s32 %s24, %s31
      %s66 = sor.u32 %s64, %s65
      %p67 = scmp.eq.s32.totalorder %s66, 0
      %s69 = sadd.s32 %s68, 1
      %s70 = scalar_select %p67, %s68, %s69
      %p73 = pneg %p67
      %p74 = scmp.eq.s32.totalorder %s16, 1
      %p75 = por %p73, %p74
      %p76 = scmp.ne.s32.totalorder %s68, %s71
      %p77 = scmp.eq.s32.totalorder %s16, 0
      %p78 = por %p76, %p77
      %p79 = scmp.ne.s32.totalorder %s68, %s71
      %p80 = scmp.eq.s32.totalorder %s21, 1
      %p81 = por %p79, %p80
      %p82 = scmp.ne.s32.totalorder %s71, %s72
      %p83 = scmp.eq.s32.totalorder %s21, 0
      %p84 = por %p82, %p83
      %p85 = scmp.ne.s32.totalorder %s71, %s72
      %p86 = scmp.eq.s32.totalorder %s22, 1
      %p87 = por %p85, %p86
      %p89 = scmp.ne.s32.totalorder %s72, %s88
      %p90 = scmp.eq.s32.totalorder %s22, 0
      %p91 = por %p89, %p90
      %s93 = sadd.s32 %s92, 1
      %p96 = scmp.eq.s32.totalorder %s16, 1
      %p97 = scmp.ne.s32.totalorder %s92, %s94
      %p98 = scmp.eq.s32.totalorder %s16, 0
      %p99 = por %p97, %p98
      %p100 = scmp.ne.s32.totalorder %s92, %s94
      %p101 = scmp.eq.s32.totalorder %s21, 1
      %p102 = por %p100, %p101
      %p103 = scmp.ne.s32.totalorder %s94, %s95
      %p104 = scmp.eq.s32.totalorder %s21, 0
      %p105 = por %p103, %p104
      %p106 = scmp.ne.s32.totalorder %s94, %s95
      %p107 = scmp.eq.s32.totalorder %s22, 1
      %p108 = por %p106, %p107
      %p110 = scmp.ne.s32.totalorder %s95, %s109
      %p111 = scmp.eq.s32.totalorder %s22, 0
      %p112 = por %p110, %p111
      %s114 = sadd.s32 %s113, 1
      %p117 = scmp.eq.s32.totalorder %s16, 1
      %p118 = scmp.ne.s32.totalorder %s113, %s115
      %p119 = scmp.eq.s32.totalorder %s16, 0
      %p120 = por %p118, %p119
      %p121 = scmp.ne.s32.totalorder %s113, %s115
      %p122 = scmp.eq.s32.totalorder %s21, 1
      %p123 = por %p121, %p122
      %p124 = scmp.ne.s32.totalorder %s115, %s116
      %p125 = scmp.eq.s32.totalorder %s21, 0
      %p126 = por %p124, %p125
      %p127 = scmp.ne.s32.totalorder %s115, %s116
      %p128 = scmp.eq.s32.totalorder %s22, 1
      %p129 = por %p127, %p128
      %p131 = scmp.ne.s32.totalorder %s116, %s130
      %p132 = scmp.eq.s32.totalorder %s22, 0
      %p133 = por %p131, %p132
      %s134 = ssub.s32 %s23, %s35
      %s135 = ssub.s32 %s24, %s31
      %s136 = sor.u32 %s134, %s135
      %p137 = scmp.eq.s32.totalorder %s136, 0
      %s139 = sadd.s32 %s138, 1
      %s140 = scalar_select %p137, %s138, %s139
      %p143 = pneg %p137
      %p144 = scmp.eq.s32.totalorder %s16, 1
      %p145 = por %p143, %p144
      %p146 = scmp.ne.s32.totalorder %s138, %s141
      %p147 = scmp.eq.s32.totalorder %s16, 0
      %p148 = por %p146, %p147
      %p149 = scmp.ne.s32.totalorder %s138, %s141
      %p150 = scmp.eq.s32.totalorder %s21, 1
      %p151 = por %p149, %p150
      %p152 = scmp.ne.s32.totalorder %s141, %s142
      %p153 = scmp.eq.s32.totalorder %s21, 0
      %p154 = por %p152, %p153
      %p155 = scmp.ne.s32.totalorder %s141, %s142
      %p156 = scmp.eq.s32.totalorder %s22, 1
      %p157 = por %p155, %p156
      %p159 = scmp.ne.s32.totalorder %s142, %s158
      %p160 = scmp.eq.s32.totalorder %s22, 0
      %p161 = por %p159, %p160
      %p162 = scmp.le.s32.totalorder 1, %s16
      %p163 = scmp.lt.s32.totalorder %s16, 3
      %p164 = pnand %p162, %p163
      %p165 = pneg %p164
      // Predicated region
      $region9: #{tpu_custom_call.1} parent=5 // pred_check
        _
      $region10: #{tpu_custom_call.1} parent=5 // pred_check_branch
        %167 = sbr.rel (%p164) target = $region12
      $region11: #{tpu_custom_call.1} parent=5 // pred_region
        %s168 = ssub.s32 %s16, 1
        // Predicated region
        $region13: #{tpu_custom_call.1} parent=11 // pred_check
          %p169 = pneg %p105
        $region14: #{tpu_custom_call.1} parent=11 // pred_check_branch
          %171 = sbr.rel (%p169) target = $region16
        $region15: #{tpu_custom_call.1} parent=11 // pred_region
          _
        $region16: #{tpu_custom_call.1} parent=11 // pred_fallthru
          _
        // Predicated region
        $region17: #{tpu_custom_call.1} parent=11 // pred_check
          %p172 = pneg %p126
        $region18: #{tpu_custom_call.1} parent=11 // pred_check_branch
          %174 = sbr.rel (%p172) target = $region20
        $region19: #{tpu_custom_call.1} parent=11 // pred_region
          _
        $region20: #{tpu_custom_call.1} parent=11 // pred_fallthru
          _
      $region12: #{tpu_custom_call.1} parent=5 // pred_fallthru
        _
      %p175 = scmp.lt.s32.totalorder %s16, 2
      // Predicated region
      $region21: #{tpu_custom_call.1} parent=5 // pred_check
        %p176 = pneg %p175
      $region22: #{tpu_custom_call.1} parent=5 // pred_check_branch
        %178 = sbr.rel (%p176) target = $region24
      $region23: #{tpu_custom_call.1} parent=5 // pred_region
        // Predicated region
        $region25: #{tpu_custom_call.1} parent=23 // pred_check
          %p179 = pneg %p50
        $region26: #{tpu_custom_call.1} parent=23 // pred_check_branch
          %181 = sbr.rel (%p179) target = $region28
        $region27: #{tpu_custom_call.1} parent=23 // pred_region
          %s182 = sand.u32 %s40, 1
          %s183 = scalar_lea.sflag [#allocation3], %s182
          %s184 = sand.u32 %s40, 1
          %s185 = smul.addr %s184, 4
          %s186 = scalar_lea.vmem [#allocation2], %s185
          %188 = vsyncadd %s183, 0
          %s189 = sadd.s32 %s24, %s23
          %s190 = smul.addr %s189, 4
          %s191 = scalar_lea.hbm %s0, %s190
          %s193 = sshll.u32 %s191, 4
          %s194 = int_to_ptr.hbm [resolvable:$true] %s193
          %s195 = sshll.u32 %s186, 4
          %s196 = int_to_ptr.vmem [resolvable:$true] %s195
          %198 = dma.hbm_to_vmem [thread:$0]  %s194, 64, %s196, %s183
        $region28: #{tpu_custom_call.1} parent=23 // pred_fallthru
          _
        // Predicated region
        $region29: #{tpu_custom_call.1} parent=23 // pred_check
          %p199 = pneg %p78
        $region30: #{tpu_custom_call.1} parent=23 // pred_check_branch
          %201 = sbr.rel (%p199) target = $region32
        $region31: #{tpu_custom_call.1} parent=23 // pred_region
          %p202 = scmp.lt.s32.totalorder %s23, 1
          %s203 = scalar_select %p202, %s23, 1
          %p204 = scmp.lt.s32.totalorder %s24, 0
          %s205 = scalar_select %p204, %s24, 0
          %s206 = sadd.s32 %s205, %s203
          %s207 = smul.addr %s206, 4
          %s208 = scalar_lea.vmem %s1, %s207
        $region32: #{tpu_custom_call.1} parent=23 // pred_fallthru
          _
      $region24: #{tpu_custom_call.1} parent=5 // pred_fallthru
        _
      %p209 = scmp.le.s32.totalorder 1, %s16
      %p210 = scmp.lt.s32.totalorder %s16, 3
      %p211 = pnand %p209, %p210
      %p212 = pneg %p211
      // Predicated region
      $region33: #{tpu_custom_call.1} parent=5 // pred_check
        _
      $region34: #{tpu_custom_call.1} parent=5 // pred_check_branch
        %214 = sbr.rel (%p211) target = $region36
      $region35: #{tpu_custom_call.1} parent=5 // pred_region
        %s215 = ssub.s32 %s16, 1
        %s216 = sand.u32 %s43, 1
        %s217 = scalar_lea.sflag [#allocation3], %s216
        %s218 = sand.u32 %s43, 1
        %s219 = smul.addr %s218, 4
        %s220 = scalar_lea.vmem [#allocation2], %s219
        // Predicated region
        $region37: #{tpu_custom_call.1} parent=35 // pred_check
          %p221 = pneg %p56
        $region38: #{tpu_custom_call.1} parent=35 // pred_check_branch
          %223 = sbr.rel (%p221) target = $region40
        $region39: #{tpu_custom_call.1} parent=35 // pred_region
          %225 = dma.done %s217, 64
        $region40: #{tpu_custom_call.1} parent=35 // pred_fallthru
          _
        %s226 = sand.u32 %s43, 1
        %s227 = scalar_lea.sflag [#allocation3], %s226
        %s228 = sand.u32 %s43, 1
        %s229 = smul.addr %s228, 4
        %s230 = scalar_lea.vmem [#allocation2], %s229
        %p231 = pneg %p56
        %p232 = pneg %p53
        %p233 = scmp.lt.s32.totalorder %s25, 1
        %s234 = scalar_select %p233, %s25, 1
        %p235 = scmp.lt.s32.totalorder %s26, 0
        %s236 = scalar_select %p235, %s26, 0
        %s237 = sadd.s32 %s236, %s234
        %s238 = smul.addr %s237, 4
        %s239 = scalar_lea.vmem %s1, %s238
        %p240 = pneg %p84
        %p241 = pneg %p81
        %p242 = pneg %p105
        %p243 = pneg %p102
        %p244 = pneg %p126
        %p245 = pneg %p123
        %p246 = pneg %p154
        %p247 = pneg %p151
        %s248 = sand.u32 %s141, 1
        %s249 = scalar_lea.sflag [#allocation4], %s248
        %s250 = sand.u32 %s141, 1
        %s251 = smul.addr %s250, 4
        %s252 = scalar_lea.vmem [#allocation5], %s251
        %p253 = scmp.lt.s32.totalorder %s25, 1
        %s254 = scalar_select %p253, %s25, 1
        %p255 = scmp.lt.s32.totalorder %s26, 0
        %s256 = scalar_select %p255, %s26, 0
        %s257 = sadd.s32 %s256, %s254
        %s258 = smul.addr %s257, 4
        %s259 = scalar_lea.vmem %s1, %s258
        %v260 = vld [vmem:[%s220] sm:$0xf]
        %v261 = vld [vmem:[%s259] sm:$0xf]
        %263 = vrot.lane.b32.xlu0 %v260, 1
        %v264 = vpop.permute.xlu0 %263
        %vm266 = vcmask 7168
        %v267 = vsel %vm266, %v261, %v264
        %268 = vrot.lane.b32.xlu0 %v260, 127
        %v269 = vpop.permute.xlu0 %268
        %272 = vrot.lane.b32.xlu0 %v261, 126
        %v273 = vpop.permute.xlu0 %272
        %vm275 = vcmask 1039360
        %v276 = vsel %vm275, %v269, %v273
        %v277 = vld [vmem:[%s2] sm:$0xf]
        %s278 = scalar_lea.vmem %s2, 4
        %v279 = vld [vmem:[%s278] sm:$0xf]
        %vm280 = vcmask 31744
        %v282 = vsel %vm280, %v279, 0
        %vm284 = vcmask 1043456
        %v285 = vsel %vm284, %v260, 0
        %287 = vmatpush.msra.mxu0 0.0
        %288 = vmatpush.msra.mxu0 0.0
        %289 = vmatpush.msra.mxu0 0.0
        %290 = vmatpush.msra.mxu0 0.0
        %291 = vmatpush.msra.mxu0 0.0
        %292 = vmatpush.msra.mxu0 0.0
        %293 = vmatpush.msra.mxu0 0.0
        %294 = vmatpush.msra.mxu0 0.0
        %295 = vmatpush.msra.mxu0 0.0
        %296 = vmatpush.msra.mxu0 0.0
        %297 = vmatpush.msra.mxu0 0.0
        %298 = vmatpush.msra.mxu0 0.0
        %299 = vmatpush.msra.mxu0 0.0
        %300 = vmatpush.msra.mxu0 0.0
        %301 = vmatpush.msra.mxu0 0.0
        %302 = vmatpush.msra.mxu0 %v285
        %303 = vmatmul.f32.gmra.mxu0 %v282
        %v304 = vpop.f32.mrf.mxu0
        %v305 = vadd.f32 0.0, %v304
        %306 = vdwg.mxu0
        %v308 = vsel %vm280, %v277, 0
        %v311 = vsel %vm284, %v267, 0
        %313 = vmatpush.msra.mxu0 0.0
        %314 = vmatpush.msra.mxu0 0.0
        %315 = vmatpush.msra.mxu0 0.0
        %316 = vmatpush.msra.mxu0 0.0
        %317 = vmatpush.msra.mxu0 0.0
        %318 = vmatpush.msra.mxu0 0.0
        %319 = vmatpush.msra.mxu0 0.0
        %320 = vmatpush.msra.mxu0 0.0
        %321 = vmatpush.msra.mxu0 0.0
        %322 = vmatpush.msra.mxu0 0.0
        %323 = vmatpush.msra.mxu0 0.0
        %324 = vmatpush.msra.mxu0 0.0
        %325 = vmatpush.msra.mxu0 0.0
        %326 = vmatpush.msra.mxu0 0.0
        %327 = vmatpush.msra.mxu0 0.0
        %328 = vmatpush.msra.mxu0 %v311
        %329 = vmatmul.f32.gmra.mxu0 %v308
        %v330 = vpop.f32.mrf.mxu0
        %v331 = vadd.f32 %v305, %v330
        %332 = vdwg.mxu0
        %s333 = scalar_lea.vmem %s2, 8
        %v334 = vld [vmem:[%s333] sm:$0xf]
        %v336 = vsel %vm280, %v334, 0
        %v339 = vsel %vm284, %v276, 0
        %341 = vmatpush.msra.mxu0 0.0
        %342 = vmatpush.msra.mxu0 0.0
        %343 = vmatpush.msra.mxu0 0.0
        %344 = vmatpush.msra.mxu0 0.0
        %345 = vmatpush.msra.mxu0 0.0
        %346 = vmatpush.msra.mxu0 0.0
        %347 = vmatpush.msra.mxu0 0.0
        %348 = vmatpush.msra.mxu0 0.0
        %349 = vmatpush.msra.mxu0 0.0
        %350 = vmatpush.msra.mxu0 0.0
        %351 = vmatpush.msra.mxu0 0.0
        %352 = vmatpush.msra.mxu0 0.0
        %353 = vmatpush.msra.mxu0 0.0
        %354 = vmatpush.msra.mxu0 0.0
        %355 = vmatpush.msra.mxu0 0.0
        %356 = vmatpush.msra.mxu0 %v339
        %357 = vmatmul.f32.gmra.mxu0 %v336
        %v358 = vpop.f32.mrf.mxu0
        %v359 = vadd.f32 0.0, %v358
        %360 = vdwg.mxu0
        %v361 = vadd.f32 %v331, %v359
        %v362 = vld [vmem:[%s3] sm:$0xf]
        %364 = vset.pattern.permute.xlu0 0
        %365 = vperm.xlu0 %364, %v362
        %v366 = vpop.permute.xlu0 %365
        %v368 = vadd.f32 %v361, %v366
        %369 = vst [vmem:[%s252] sm:$0xf] %v368
        %s370 = sand.u32 %s141, 1
        %s371 = scalar_lea.sflag [#allocation4], %s370
        %s372 = sand.u32 %s141, 1
        %s373 = smul.addr %s372, 4
        %s374 = scalar_lea.vmem [#allocation5], %s373
        // Predicated region
        $region41: #{tpu_custom_call.1} parent=35 // pred_check
          %p375 = pneg %p151
        $region42: #{tpu_custom_call.1} parent=35 // pred_check_branch
          %377 = sbr.rel (%p375) target = $region44
        $region43: #{tpu_custom_call.1} parent=35 // pred_region
          %379 = vsyncadd %s371, 0
          %s380 = sadd.s32 %s26, %s25
          %s381 = smul.addr %s380, 4
          %s382 = scalar_lea.hbm %s4, %s381
          %s384 = sshll.u32 %s374, 4
          %s385 = int_to_ptr.vmem [resolvable:$true] %s384
          %s386 = sshll.u32 %s382, 4
          %s387 = int_to_ptr.hbm [resolvable:$true] %s386
          %389 = dma.vmem_to_hbm [thread:$0]  %s385, 64, %s387, %s371
        $region44: #{tpu_custom_call.1} parent=35 // pred_fallthru
          _
      $region36: #{tpu_custom_call.1} parent=5 // pred_fallthru
        _
      %p390 = scmp.le.s32.totalorder 2, %s16
      // Predicated region
      $region45: #{tpu_custom_call.1} parent=5 // pred_check
        %p391 = pneg %p390
      $region46: #{tpu_custom_call.1} parent=5 // pred_check_branch
        %393 = sbr.rel (%p391) target = $region48
      $region47: #{tpu_custom_call.1} parent=5 // pred_region
        %s394 = ssub.s32 %s16, 2
        // Predicated region
        $region49: #{tpu_custom_call.1} parent=47 // pred_check
          %p395 = pneg %p157
        $region50: #{tpu_custom_call.1} parent=47 // pred_check_branch
          %397 = sbr.rel (%p395) target = $region52
        $region51: #{tpu_custom_call.1} parent=47 // pred_region
          %s398 = sand.u32 %s142, 1
          %s399 = scalar_lea.sflag [#allocation4], %s398
          %s400 = sand.u32 %s142, 1
          %s401 = smul.addr %s400, 4
          %s402 = scalar_lea.vmem [#allocation5], %s401
          %404 = dma.done %s399, 64
        $region52: #{tpu_custom_call.1} parent=47 // pred_fallthru
          _
      $region48: #{tpu_custom_call.1} parent=5 // pred_fallthru
        _
    $region6: #{tpu_custom_call.1} parent=1 // loop_footer
      %s20 = sadd.s32 1, %s16
    $region7: #{tpu_custom_call.1} parent=1 // loop_footer_branch
      %15 = sbr.rel target = $region3
    $region8: #{tpu_custom_call.1} parent=1 // loop_exit
      _
    %405 = vsyncpa [#allocation3], 1
    %s406 = scalar_lea.sflag [#allocation3], 1
    %407 = vsyncpa %s406, 1
    %408 = vsyncpa [#allocation4], 1
    %s409 = scalar_lea.sflag [#allocation4], 1
    %410 = vsyncpa %s409, 1

</llo_original>
